<compile_context>
chip_gen: v6e
topology: v6e:2x2x1
jax: 0.10.0
libtpu: 0.0.40
codegen_flags: <defaults>
</compile_context>

<pallas_src>
import jax
import jax.numpy as jnp
from jax.experimental import pallas as pl
from jax.experimental.pallas import tpu as pltpu


# ---------------------------------------------------------------------------
# The hook: exact module semantics, zero device cost (review opt #1).
# ---------------------------------------------------------------------------
def flash_attn_flops_hook(qkv):
    """Identity pass-through of qkv with flops accounting.

    Mirrors FlashAttnFlopsHook.forward: returns qkv unchanged and the flops
    increment 2 * b * l * l * h * d as an exact Python int (the equivalent of
    `self.__flops__ += ...`).  No device kernel is launched here — qkv is
    returned as-is, so XLA sees no extra op, no copy, no fusion boundary.
    (For on-trace visibility one could wrap callers in
    jax.named_scope("flash_attn_flops_hook"); no device op is needed.)
    """
    b, l, three, h, d = qkv.shape
    assert three == 3, "qkv must have shape (b, l, 3, h, d)"

    # Host-side counter arithmetic, exactly like `self.__flops__ += ...`.
    flops = 2 * b * l * l * h * d

    # TODO(synk): MODULES_MAPPING registration / the self.__flops__ attribute
    # are Python-side framework bookkeeping with no device-side equivalent;
    # the flops value is returned to the caller instead.
    return qkv, flops


# ---------------------------------------------------------------------------
# Optional on-device publication of the counter (review opt #2 / #5).
# The kernel never touches qkv; it only copies two 32-bit words SMEM->SMEM.
# ---------------------------------------------------------------------------
def _flops_scalar_kernel(hi_lo_ref, out_ref):
    # Pure scalar bookkeeping: two 32-bit SMEM words, no vector units, no
    # HBM tensor traffic, no VMEM.
    out_ref[0] = hi_lo_ref[0]
    out_ref[1] = hi_lo_ref[1]


def publish_flops_on_device(flops: int):
    """Publish the (exact) flops counter on-device as [hi, lo] uint32 words.

    Kept separate from the hook so the hot path stays kernel-free; call this
    only when on-device visibility of the counter is explicitly desired.
    """
    hi_lo = jnp.array(
        [(flops >> 32) & 0xFFFFFFFF, flops & 0xFFFFFFFF], dtype=jnp.uint32
    )
    return pl.pallas_call(
        _flops_scalar_kernel,
        out_shape=jax.ShapeDtypeStruct((2,), jnp.uint32),
        in_specs=[pl.BlockSpec(memory_space=pltpu.MemorySpace.SMEM)],
        out_specs=pl.BlockSpec(memory_space=pltpu.MemorySpace.SMEM),
        # Honest cost: 8 bytes read + 8 bytes written, zero flops.
        cost_estimate=pl.CostEstimate(flops=0, transcendentals=0, bytes_accessed=16),
    )(hi_lo)


if __name__ == "__main__":
    # Small deterministic example consistent with qkv shape (b, l, 3, h, d).
    b, l, h, d = 2, 8, 4, 32
    key = jax.random.PRNGKey(0)
    qkv = jax.random.normal(key, (b, l, 3, h, d), dtype=jnp.float32)

    # Hook: identity + exact host-side counter, zero device cost.
    out, flops = flash_attn_flops_hook(qkv)
    out = jax.block_until_ready(out)

    assert out.shape == qkv.shape
    assert out.dtype == qkv.dtype
    assert out is qkv                      # true pass-through, no copy at all
    assert bool(jnp.all(out == qkv))
    assert flops == 2 * b * l * l * h * d

    # Optional on-device publication of the counter via the Pallas kernel.
    flops_dev = jax.block_until_ready(publish_flops_on_device(flops))
    flops_roundtrip = (int(flops_dev[0]) << 32) | int(flops_dev[1])
    assert flops_roundtrip == flops        # exact, no float32 rounding

    print("KERNEL_OK")
</pallas_src>

<mosaic_0001>
module attributes {stable_mosaic.version = 11 : i64} {
  func.func @_flops_scalar_kernel(%arg0: memref<2xi32, #tpu.memory_space<smem>>, %arg1: memref<2xi32, #tpu.memory_space<smem>>) attributes {dimension_semantics = [], scalar_prefetch = 0 : i64, scratch_operands = 0 : i64, tpu.core_type = #tpu.core_type<tc>} {
    %c0 = arith.constant 0 : index
    %0 = memref.load %arg0[%c0] : memref<2xi32, #tpu.memory_space<smem>>
    %c0_0 = arith.constant 0 : index
    %1 = memref.load %arg1[%c0_0] : memref<2xi32, #tpu.memory_space<smem>>
    memref.store %0, %arg1[%c0_0] : memref<2xi32, #tpu.memory_space<smem>>
    %c1 = arith.constant 1 : index
    %2 = memref.load %arg0[%c1] : memref<2xi32, #tpu.memory_space<smem>>
    %c1_1 = arith.constant 1 : index
    %3 = memref.load %arg1[%c1_1] : memref<2xi32, #tpu.memory_space<smem>>
    memref.store %2, %arg1[%c1_1] : memref<2xi32, #tpu.memory_space<smem>>
    return
  }
}

</mosaic_0001>

<llo_original>
// kernel: tpu_custom_call.1
$region0: #{tpu_custom_call.1}
  #allocation0 [shape = 'u32[]', space=smem, size = 0x4, offset = 0x4, fixed_abs, tag = 'smem constant byte address 0x4 - core index']
  #allocation1 [shape = 'u32[144,128]{1,0:T(1,128)}', space=vmem, size = 0x12000, scoped, tag = 'internal scratch']
  %s0 = inlined_call_operand.hbm [shape: u32[2], index: 0, kind: input, shape index: {}]
  %s1 = inlined_call_operand.hbm [shape: u32[2], index: 1, kind: output, shape index: {}]
  %s2 = sld [smem:[#allocation0]]
  $region18: #{tpu_custom_call.1} parent=0
    _
  %s4 = ssub.s32 1, %s2
  %s5 = scalar_select 0, %s4, %s2
  $region1: #{tpu_custom_call.1} parent=0
    #allocation2 [shape = 'u8[512]{0}', space=smem, size = 0x200, scoped, tag = 'input window, operand 0, single buffered']
    #allocation3 [shape = 's32[1]{0}', space=sflag, size = 0x4, scoped, tag = 'scoped memory for tpu_custom_call.1']
    #allocation4 [shape = 's32[1]{0}', space=sflag, size = 0x4, scoped, tag = 'scoped memory for tpu_custom_call.1']
    #allocation5 [shape = 'u8[512]{0}', space=smem, size = 0x200, scoped, tag = 'output window, operand 0, single buffered']
    %6 = vsyncpa [#allocation3], 0
    %7 = vsyncpa [#allocation4], 0
    // Predicated region
    $region2: #{tpu_custom_call.1} parent=1 // pred_check
      _
    $region3: #{tpu_custom_call.1} parent=1 // pred_check_branch
      %9 = sbr.rel (0) target = $region5
    $region4: #{tpu_custom_call.1} parent=1 // pred_region
      %s11 = ssub.s32 16, 16
      %12 = vsyncadd [#allocation3], %s11
      %15 = dma.hbm_to_smem %s0, 16, [#allocation2], [#allocation3]
    $region5: #{tpu_custom_call.1} parent=1 // pred_fallthru
      _
    // Predicated region
    $region6: #{tpu_custom_call.1} parent=1 // pred_check
      _
    $region7: #{tpu_custom_call.1} parent=1 // pred_check_branch
      %17 = sbr.rel (0) target = $region9
    $region8: #{tpu_custom_call.1} parent=1 // pred_region
      %18 = dma.done [#allocation3], 16
    $region9: #{tpu_custom_call.1} parent=1 // pred_fallthru
      _
    %19 = sfence
    %s20 = sld [smem:[#allocation2]]
    %s21 = scalar_lea.smem [#allocation5], 0
    %22 = sst [smem:[%s21]] %s20
    %s23 = sld [smem:[#allocation2 + $0x1]]
    %s24 = scalar_lea.smem [#allocation5], 1
    %25 = sst [smem:[%s24]] %s23
    // Predicated region
    $region10: #{tpu_custom_call.1} parent=1 // pred_check
      _
    $region11: #{tpu_custom_call.1} parent=1 // pred_check_branch
      %27 = sbr.rel (0) target = $region13
    $region12: #{tpu_custom_call.1} parent=1 // pred_region
      %s29 = ssub.s32 16, 16
      %30 = vsyncadd [#allocation4], %s29
      %33 = dma.smem_to_hbm [#allocation5], 16, %s1, [#allocation4]
    $region13: #{tpu_custom_call.1} parent=1 // pred_fallthru
      _
    // Predicated region
    $region14: #{tpu_custom_call.1} parent=1 // pred_check
      _
    $region15: #{tpu_custom_call.1} parent=1 // pred_check_branch
      %35 = sbr.rel (0) target = $region17
    $region16: #{tpu_custom_call.1} parent=1 // pred_region
      %36 = dma.done [#allocation4], 16
    $region17: #{tpu_custom_call.1} parent=1 // pred_fallthru
      _
    %37 = sfence
    %38 = vsyncpa [#allocation3], 1
    %39 = vsyncpa [#allocation4], 1

</llo_original>
